<compile_context>
chip_gen: v7x
topology: tpu7x:2x2x1
jax: 0.10.0
libtpu: 0.0.40
codegen_flags: <defaults>
</compile_context>

<pallas_src>
from functools import partial

import numpy as np
import jax
import jax.numpy as jnp
from jax.experimental import pallas as pl
from jax.experimental.pallas import tpu as pltpu

EPS_BPR = 1e-10


# ----------------------------- Pallas kernel ------------------------------- #

def _dice_kernel(emb_ref, sc_ref, out_ref):
    """Per-row DICE contributions, lane-dense over rows.

    emb_ref: (6, E, T) stacked, transposed gathered rows
             [ui, up, ipi, ipp, ini, inp]  (rows map to lanes)
    sc_ref:  (5, T) per-row scalars [mask, valid, w_user, w_item_p, w_item_n]
    out_ref: (5, T) per-row contributions
             [int_term, pop_term, total_term, item_sqdiff, user_sqdiff]
    """
    ui, up = emb_ref[0], emb_ref[1]
    ipi, ipp = emb_ref[2], emb_ref[3]
    ini, inp = emb_ref[4], emb_ref[5]

    d_ip = ipi - ipp
    d_in = ini - inp
    d_u = ui - up

    # Row-wise reductions over E (=32 sublanes) -> (1, T) lane-dense results.
    def rowsum(x):
        return jnp.sum(x, axis=0, keepdims=True)

    p_int = rowsum(ui * ipi)
    n_int = rowsum(ui * ini)
    p_pop = rowsum(up * ipp)
    n_pop = rowsum(up * inp)
    sq_ip = rowsum(d_ip * d_ip)
    sq_in = rowsum(d_in * d_in)
    sq_u = rowsum(d_u * d_u)

    mask = sc_ref[0:1, :]
    valid = sc_ref[1:2, :]
    w_u = sc_ref[2:3, :]
    w_ip = sc_ref[3:4, :]
    w_in = sc_ref[4:5, :]

    p_tot = p_int + p_pop
    n_tot = n_int + n_pop

    # TODO(synk): logsigmoid(-x) = logsigmoid(x) - x would roughly halve the
    # EUP work of the two loss_pop terms, but it changes the +1e-10 epsilon
    # semantics of the PyTorch reference, so the exact form is kept.
    def log_sig_eps(x):
        return jnp.log(jax.nn.sigmoid(x) + EPS_BPR)

    out_ref[0:1, :] = valid * mask * log_sig_eps(p_int - n_int)
    out_ref[1:2, :] = valid * (mask * log_sig_eps(n_pop - p_pop)
                               + (1.0 - mask) * log_sig_eps(p_pop - n_pop))
    out_ref[2:3, :] = valid * log_sig_eps(p_tot - n_tot)
    out_ref[3:4, :] = w_ip * sq_ip + w_in * sq_in   # weights are 0 on padded rows
    out_ref[4:5, :] = w_u * sq_u


def _row_dim_semantics():
    """Row tiles are independent.  On v7x (2 TensorCores/chip) shard the row
    axis explicitly across cores; elsewhere keep plain 'parallel'."""
    try:
        kind = jax.devices()[0].device_kind.lower()
    except Exception:  # pragma: no cover - defensive
        kind = ""
    if "v7" in kind:
        return (pltpu.CORE_PARALLEL,)
    return ("parallel",)


def _dice_row_contributions(emb_t, row_scalars, tile_rows):
    six, e, r_pad = emb_t.shape
    grid = (r_pad // tile_rows,)
    return pl.pallas_call(
        _dice_kernel,
        out_shape=jax.ShapeDtypeStruct((5, r_pad), jnp.float32),
        grid_spec=pltpu.PrefetchScalarGridSpec(
            num_scalar_prefetch=0,
            grid=grid,
            in_specs=[
                # (6, E, tile): E == full dim (32), tile is a multiple of 128.
                pl.BlockSpec((six, e, tile_rows), lambda i: (0, 0, i)),
                pl.BlockSpec((5, tile_rows), lambda i: (0, i)),
            ],
            out_specs=pl.BlockSpec((5, tile_rows), lambda i: (0, i)),
        ),
        compiler_params=pltpu.CompilerParams(
            dimension_semantics=_row_dim_semantics(),
        ),
    )(emb_t, row_scalars)


# ----------------------------- JAX-side glue -------------------------------- #

def _round_up(x, m):
    return ((x + m - 1) // m) * m


def _pad_rows(x, n):
    pad = n - x.shape[0]
    if pad == 0:
        return x
    return jnp.pad(x, [(0, pad)] + [(0, 0)] * (x.ndim - 1))


def _unique_occurrence_weights(idx, num_buckets):
    """1.0 at exactly one (the first) occurrence of each distinct value.

    Sort-free: scatter-min of the row position into a table-sized buffer,
    then compare (O(R) instead of a bitonic sort)."""
    n = idx.shape[0]
    pos = jnp.arange(n, dtype=jnp.int32)
    first = jnp.full((num_buckets,), n, jnp.int32).at[idx].min(pos)
    return (first[idx] == pos).astype(jnp.float32)


@partial(jax.jit, static_argnames=("tile_rows",))
def dice_forward(users_int, users_pop, items_int, items_pop,
                 user, item_p, item_n, mask,
                 int_weight, pop_weight, dis_pen, *, tile_rows=2048):
    num_users = users_int.shape[0]
    num_items = items_int.shape[0]
    e = users_int.shape[1]

    user_f = user.reshape(-1).astype(jnp.int32)
    item_p_f = item_p.reshape(-1).astype(jnp.int32)
    item_n_f = item_n.reshape(-1).astype(jnp.int32)
    mask_f = mask.reshape(-1).astype(jnp.float32)
    r = user_f.shape[0]

    # Rows map to lanes, so the row tile must be a multiple of 128.
    tile = max(128, (min(tile_rows, _round_up(r, 128)) // 128) * 128)
    r_pad = _round_up(r, tile)

    user_pad = _pad_rows(user_f, r_pad)
    item_p_pad = _pad_rows(item_p_f, r_pad)
    item_n_pad = _pad_rows(item_n_f, r_pad)

    # Gathers stay in XLA (see TODO at top of file); rows are stacked and
    # transposed to (6, E, r_pad) so the kernel sees lane-dense tiles.
    emb_t = jnp.stack([
        jnp.take(users_int, user_pad, axis=0).T,
        jnp.take(users_pop, user_pad, axis=0).T,
        jnp.take(items_int, item_p_pad, axis=0).T,
        jnp.take(items_pop, item_p_pad, axis=0).T,
        jnp.take(items_int, item_n_pad, axis=0).T,
        jnp.take(items_pop, item_n_pad, axis=0).T,
    ], axis=0)                                              # (6, e, r_pad)

    valid = (jnp.arange(r_pad) < r).astype(jnp.float32)
    w_user = _unique_occurrence_weights(user_f, num_users)              # (r,)
    w_item = _unique_occurrence_weights(
        jnp.concatenate([item_p_f, item_n_f]), num_items)               # (2r,)
    n_user_u = jnp.sum(w_user)
    n_item_u = jnp.sum(w_item)

    row_scalars = jnp.stack([
        _pad_rows(mask_f, r_pad),
        valid,
        _pad_rows(w_user, r_pad),
        _pad_rows(w_item[:r], r_pad),
        _pad_rows(w_item[r:], r_pad),
    ], axis=0)                                              # (5, r_pad)

    contrib = _dice_row_contributions(emb_t, row_scalars, tile)   # (5, r_pad)
    sums = jnp.sum(contrib, axis=1)                                # (5,)

    loss_int = -sums[0] / r
    loss_pop = -sums[1] / r
    loss_total = -sums[2] / r
    discrepancy = sums[3] / (n_item_u * e) + sums[4] / (n_user_u * e)

    return (int_weight * loss_int + pop_weight * loss_pop + loss_total
            - dis_pen * discrepancy)


# ------------------------------- DICE module -------------------------------- #

class DICEPallas:
    def __init__(self, num_users, num_items, embedding_size,
                 dis_pen, int_weight, pop_weight, key):
        k1, k2, k3, k4 = jax.random.split(key, 4)
        # nn.Embedding default init: N(0, 1)
        self.users_int = jax.random.normal(k1, (num_users, embedding_size), jnp.float32)
        self.users_pop = jax.random.normal(k2, (num_users, embedding_size), jnp.float32)
        self.items_int = jax.random.normal(k3, (num_items, embedding_size), jnp.float32)
        self.items_pop = jax.random.normal(k4, (num_items, embedding_size), jnp.float32)
        self.int_weight = int_weight
        self.pop_weight = pop_weight
        self.dis_pen = dis_pen

    def forward(self, user, item_p, item_n, mask, tile_rows=2048):
        return dice_forward(self.users_int, self.users_pop,
                            self.items_int, self.items_pop,
                            user, item_p, item_n, mask,
                            self.int_weight, self.pop_weight, self.dis_pen,
                            tile_rows=tile_rows)


# ---------------------------- numpy reference -------------------------------- #

def reference_loss(model, user, item_p, item_n, mask):
    def emb(tbl, idx):
        return np.asarray(tbl)[np.asarray(idx)]

    ui, up = emb(model.users_int, user), emb(model.users_pop, user)
    ipi, ipp = emb(model.items_int, item_p), emb(model.items_pop, item_p)
    ini, inp = emb(model.items_int, item_n), emb(model.items_pop, item_n)
    m = np.asarray(mask).astype(np.float32)

    def sig(x):
        return 1.0 / (1.0 + np.exp(-x))

    p_int = (ui * ipi).sum(-1)
    n_int = (ui * ini).sum(-1)
    p_pop = (up * ipp).sum(-1)
    n_pop = (up * inp).sum(-1)
    p_tot, n_tot = p_int + p_pop, n_int + n_pop

    def mbpr(p, n, mm):
        return -np.mean(mm * np.log(sig(p - n) + EPS_BPR))

    loss_int = mbpr(p_int, n_int, m)
    loss_pop = mbpr(n_pop, p_pop, m) + mbpr(p_pop, n_pop, 1.0 - m)
    loss_total = -np.mean(np.log(sig(p_tot - n_tot) + EPS_BPR))

    item_all = np.unique(np.concatenate(
        [np.asarray(item_p), np.asarray(item_n)]).reshape(-1))
    user_all = np.unique(np.asarray(user).reshape(-1))
    disc = (np.mean((emb(model.items_int, item_all) - emb(model.items_pop, item_all)) ** 2)
            + np.mean((emb(model.users_int, user_all) - emb(model.users_pop, user_all)) ** 2))

    return (model.int_weight * loss_int + model.pop_weight * loss_pop
            + loss_total - model.dis_pen * disc)


# ----------------------------------- main ----------------------------------- #

if __name__ == "__main__":
    key = jax.random.PRNGKey(0)
    k_model, k_u, k_p, k_n, k_m = jax.random.split(key, 5)

    num_users, num_items, emb_size = 300, 500, 32
    B, L = 2, 96   # user/item_p/item_n/mask: (B, L) -> R = 192 rows

    model = DICEPallas(num_users, num_items, emb_size,
                       dis_pen=0.01, int_weight=0.1, pop_weight=0.1, key=k_model)

    user = jax.random.randint(k_u, (B, L), 0, num_users, dtype=jnp.int32)
    item_p = jax.random.randint(k_p, (B, L), 0, num_items, dtype=jnp.int32)
    item_n = jax.random.randint(k_n, (B, L), 0, num_items, dtype=jnp.int32)
    mask = jax.random.bernoulli(k_m, 0.5, (B, L))

    # tile_rows=128 -> grid of 2 row-tiles, exercising the tiled/pipelined path.
    loss = model.forward(user, item_p, item_n, mask, tile_rows=128)
    loss = jax.block_until_ready(loss)

    ref = reference_loss(model, user, item_p, item_n, mask)
    np.testing.assert_allclose(np.asarray(loss), ref, rtol=2e-3, atol=2e-3)

    print("KERNEL_OK")
</pallas_src>

<mosaic_0001>
module attributes {stable_mosaic.version = 11 : i64} {
  func.func private @main(%arg0: i32) attributes {dimension_semantics = [#tpu.dimension_semantics<core_parallel>], iteration_bounds = array<i64: 2>, tpu.core_type = #tpu.core_type<sc_scalar_subcore>, window_params = []} {
    return
  }
}

module attributes {stable_mosaic.version = 11 : i64} {
  func.func private @main(%arg0: i32) attributes {dimension_semantics = [#tpu.dimension_semantics<core_parallel>], iteration_bounds = array<i64: 2>, tpu.core_type = #tpu.core_type<sc_scalar_subcore>, window_params = []} {
    return
  }
}

module attributes {stable_mosaic.version = 11 : i64} {
  func.func @_dice_kernel(%arg0: i32, %arg1: memref<6x32x128xf32, #tpu.memory_space<vmem>>, %arg2: memref<5x128xf32, #tpu.memory_space<vmem>>, %arg3: memref<5x128xf32, #tpu.memory_space<vmem>>) attributes {dimension_semantics = [#tpu.dimension_semantics<parallel>], iteration_bounds = array<i64: 2>, scalar_prefetch = 0 : i64, scratch_operands = 0 : i64, tpu.core_type = #tpu.core_type<tc>, window_params = [{transform_indices = @transform_0, window_bounds = array<i64: 6, 32, 128>}, {transform_indices = @transform_1, window_bounds = array<i64: 5, 128>}, {transform_indices = @transform_2, window_bounds = array<i64: 5, 128>}]} {
    %c0 = arith.constant 0 : index
    %c0_0 = arith.constant 0 : index
    %c0_1 = arith.constant 0 : index
    %0 = vector.load %arg1[%c0, %c0_0, %c0_1] : memref<6x32x128xf32, #tpu.memory_space<vmem>>, vector<1x32x128xf32>
    %1 = vector.shape_cast %0 : vector<1x32x128xf32> to vector<32x128xf32>
    %c1 = arith.constant 1 : index
    %c0_2 = arith.constant 0 : index
    %c0_3 = arith.constant 0 : index
    %2 = vector.load %arg1[%c1, %c0_2, %c0_3] : memref<6x32x128xf32, #tpu.memory_space<vmem>>, vector<1x32x128xf32>
    %3 = vector.shape_cast %2 : vector<1x32x128xf32> to vector<32x128xf32>
    %c2 = arith.constant 2 : index
    %c0_4 = arith.constant 0 : index
    %c0_5 = arith.constant 0 : index
    %4 = vector.load %arg1[%c2, %c0_4, %c0_5] : memref<6x32x128xf32, #tpu.memory_space<vmem>>, vector<1x32x128xf32>
    %5 = vector.shape_cast %4 : vector<1x32x128xf32> to vector<32x128xf32>
    %c3 = arith.constant 3 : index
    %c0_6 = arith.constant 0 : index
    %c0_7 = arith.constant 0 : index
    %6 = vector.load %arg1[%c3, %c0_6, %c0_7] : memref<6x32x128xf32, #tpu.memory_space<vmem>>, vector<1x32x128xf32>
    %7 = vector.shape_cast %6 : vector<1x32x128xf32> to vector<32x128xf32>
    %c4 = arith.constant 4 : index
    %c0_8 = arith.constant 0 : index
    %c0_9 = arith.constant 0 : index
    %8 = vector.load %arg1[%c4, %c0_8, %c0_9] : memref<6x32x128xf32, #tpu.memory_space<vmem>>, vector<1x32x128xf32>
    %9 = vector.shape_cast %8 : vector<1x32x128xf32> to vector<32x128xf32>
    %c5 = arith.constant 5 : index
    %c0_10 = arith.constant 0 : index
    %c0_11 = arith.constant 0 : index
    %10 = vector.load %arg1[%c5, %c0_10, %c0_11] : memref<6x32x128xf32, #tpu.memory_space<vmem>>, vector<1x32x128xf32>
    %11 = vector.shape_cast %10 : vector<1x32x128xf32> to vector<32x128xf32>
    %12 = arith.subf %5, %7 : vector<32x128xf32>
    %13 = arith.subf %9, %11 : vector<32x128xf32>
    %14 = arith.subf %1, %3 : vector<32x128xf32>
    %15 = arith.mulf %1, %5 : vector<32x128xf32>
    %cst = arith.constant dense<0.000000e+00> : vector<128xf32>
    %16 = vector.multi_reduction <add>, %15, %cst [0] : vector<32x128xf32> to vector<128xf32>
    %17 = vector.shape_cast %16 : vector<128xf32> to vector<1x128xf32>
    %18 = arith.mulf %1, %9 : vector<32x128xf32>
    %cst_12 = arith.constant dense<0.000000e+00> : vector<128xf32>
    %19 = vector.multi_reduction <add>, %18, %cst_12 [0] : vector<32x128xf32> to vector<128xf32>
    %20 = vector.shape_cast %19 : vector<128xf32> to vector<1x128xf32>
    %21 = arith.mulf %3, %7 : vector<32x128xf32>
    %cst_13 = arith.constant dense<0.000000e+00> : vector<128xf32>
    %22 = vector.multi_reduction <add>, %21, %cst_13 [0] : vector<32x128xf32> to vector<128xf32>
    %23 = vector.shape_cast %22 : vector<128xf32> to vector<1x128xf32>
    %24 = arith.mulf %3, %11 : vector<32x128xf32>
    %cst_14 = arith.constant dense<0.000000e+00> : vector<128xf32>
    %25 = vector.multi_reduction <add>, %24, %cst_14 [0] : vector<32x128xf32> to vector<128xf32>
    %26 = vector.shape_cast %25 : vector<128xf32> to vector<1x128xf32>
    %27 = arith.mulf %12, %12 : vector<32x128xf32>
    %cst_15 = arith.constant dense<0.000000e+00> : vector<128xf32>
    %28 = vector.multi_reduction <add>, %27, %cst_15 [0] : vector<32x128xf32> to vector<128xf32>
    %29 = vector.shape_cast %28 : vector<128xf32> to vector<1x128xf32>
    %30 = arith.mulf %13, %13 : vector<32x128xf32>
    %cst_16 = arith.constant dense<0.000000e+00> : vector<128xf32>
    %31 = vector.multi_reduction <add>, %30, %cst_16 [0] : vector<32x128xf32> to vector<128xf32>
    %32 = vector.shape_cast %31 : vector<128xf32> to vector<1x128xf32>
    %33 = arith.mulf %14, %14 : vector<32x128xf32>
    %cst_17 = arith.constant dense<0.000000e+00> : vector<128xf32>
    %34 = vector.multi_reduction <add>, %33, %cst_17 [0] : vector<32x128xf32> to vector<128xf32>
    %35 = vector.shape_cast %34 : vector<128xf32> to vector<1x128xf32>
    %c0_18 = arith.constant 0 : index
    %c0_19 = arith.constant 0 : index
    %36 = vector.load %arg2[%c0_18, %c0_19] : memref<5x128xf32, #tpu.memory_space<vmem>>, vector<1x128xf32>
    %c1_20 = arith.constant 1 : index
    %c0_21 = arith.constant 0 : index
    %37 = vector.load %arg2[%c1_20, %c0_21] : memref<5x128xf32, #tpu.memory_space<vmem>>, vector<1x128xf32>
    %c2_22 = arith.constant 2 : index
    %c0_23 = arith.constant 0 : index
    %38 = vector.load %arg2[%c2_22, %c0_23] : memref<5x128xf32, #tpu.memory_space<vmem>>, vector<1x128xf32>
    %c3_24 = arith.constant 3 : index
    %c0_25 = arith.constant 0 : index
    %39 = vector.load %arg2[%c3_24, %c0_25] : memref<5x128xf32, #tpu.memory_space<vmem>>, vector<1x128xf32>
    %c4_26 = arith.constant 4 : index
    %c0_27 = arith.constant 0 : index
    %40 = vector.load %arg2[%c4_26, %c0_27] : memref<5x128xf32, #tpu.memory_space<vmem>>, vector<1x128xf32>
    %41 = arith.addf %17, %23 : vector<1x128xf32>
    %42 = arith.addf %20, %26 : vector<1x128xf32>
    %43 = arith.mulf %37, %36 : vector<1x128xf32>
    %44 = arith.subf %17, %20 : vector<1x128xf32>
    %45 = arith.negf %44 : vector<1x128xf32>
    %46 = math.exp %45 : vector<1x128xf32>
    %cst_28 = arith.constant 1.000000e+00 : f32
    %47 = vector.broadcast %cst_28 : f32 to vector<1x128xf32>
    %48 = arith.addf %47, %46 : vector<1x128xf32>
    %49 = arith.divf %47, %48 : vector<1x128xf32>
    %cst_29 = arith.constant 1.000000e-10 : f32
    %50 = vector.broadcast %cst_29 : f32 to vector<1x128xf32>
    %51 = arith.addf %49, %50 : vector<1x128xf32>
    %52 = math.log %51 : vector<1x128xf32>
    %53 = arith.mulf %43, %52 : vector<1x128xf32>
    %c0_30 = arith.constant 0 : index
    %c0_31 = arith.constant 0 : index
    %54 = vector.load %arg3[%c0_30, %c0_31] : memref<5x128xf32, #tpu.memory_space<vmem>>, vector<1x128xf32>
    tpu.vector_store %arg3[%c0_30, %c0_31], %53 {strides = array<i32>} : memref<5x128xf32, #tpu.memory_space<vmem>>, vector<1x128xf32>,
    %55 = arith.subf %26, %23 : vector<1x128xf32>
    %56 = arith.negf %55 : vector<1x128xf32>
    %57 = math.exp %56 : vector<1x128xf32>
    %cst_32 = arith.constant 1.000000e+00 : f32
    %58 = vector.broadcast %cst_32 : f32 to vector<1x128xf32>
    %59 = arith.addf %58, %57 : vector<1x128xf32>
    %60 = arith.divf %58, %59 : vector<1x128xf32>
    %cst_33 = arith.constant 1.000000e-10 : f32
    %61 = vector.broadcast %cst_33 : f32 to vector<1x128xf32>
    %62 = arith.addf %60, %61 : vector<1x128xf32>
    %63 = math.log %62 : vector<1x128xf32>
    %64 = arith.mulf %36, %63 : vector<1x128xf32>
    %cst_34 = arith.constant 1.000000e+00 : f32
    %65 = vector.broadcast %cst_34 : f32 to vector<1x128xf32>
    %66 = arith.subf %65, %36 : vector<1x128xf32>
    %67 = arith.subf %23, %26 : vector<1x128xf32>
    %68 = arith.negf %67 : vector<1x128xf32>
    %69 = math.exp %68 : vector<1x128xf32>
    %cst_35 = arith.constant 1.000000e+00 : f32
    %70 = vector.broadcast %cst_35 : f32 to vector<1x128xf32>
    %71 = arith.addf %70, %69 : vector<1x128xf32>
    %72 = arith.divf %70, %71 : vector<1x128xf32>
    %cst_36 = arith.constant 1.000000e-10 : f32
    %73 = vector.broadcast %cst_36 : f32 to vector<1x128xf32>
    %74 = arith.addf %72, %73 : vector<1x128xf32>
    %75 = math.log %74 : vector<1x128xf32>
    %76 = arith.mulf %66, %75 : vector<1x128xf32>
    %77 = arith.addf %64, %76 : vector<1x128xf32>
    %78 = arith.mulf %37, %77 : vector<1x128xf32>
    %c1_37 = arith.constant 1 : index
    %c0_38 = arith.constant 0 : index
    %79 = vector.load %arg3[%c1_37, %c0_38] : memref<5x128xf32, #tpu.memory_space<vmem>>, vector<1x128xf32>
    tpu.vector_store %arg3[%c1_37, %c0_38], %78 {strides = array<i32>} : memref<5x128xf32, #tpu.memory_space<vmem>>, vector<1x128xf32>,
    %80 = arith.subf %41, %42 : vector<1x128xf32>
    %81 = arith.negf %80 : vector<1x128xf32>
    %82 = math.exp %81 : vector<1x128xf32>
    %cst_39 = arith.constant 1.000000e+00 : f32
    %83 = vector.broadcast %cst_39 : f32 to vector<1x128xf32>
    %84 = arith.addf %83, %82 : vector<1x128xf32>
    %85 = arith.divf %83, %84 : vector<1x128xf32>
    %cst_40 = arith.constant 1.000000e-10 : f32
    %86 = vector.broadcast %cst_40 : f32 to vector<1x128xf32>
    %87 = arith.addf %85, %86 : vector<1x128xf32>
    %88 = math.log %87 : vector<1x128xf32>
    %89 = arith.mulf %37, %88 : vector<1x128xf32>
    %c2_41 = arith.constant 2 : index
    %c0_42 = arith.constant 0 : index
    %90 = vector.load %arg3[%c2_41, %c0_42] : memref<5x128xf32, #tpu.memory_space<vmem>>, vector<1x128xf32>
    tpu.vector_store %arg3[%c2_41, %c0_42], %89 {strides = array<i32>} : memref<5x128xf32, #tpu.memory_space<vmem>>, vector<1x128xf32>,
    %91 = arith.mulf %39, %29 : vector<1x128xf32>
    %92 = arith.mulf %40, %32 : vector<1x128xf32>
    %93 = arith.addf %91, %92 : vector<1x128xf32>
    %c3_43 = arith.constant 3 : index
    %c0_44 = arith.constant 0 : index
    %94 = vector.load %arg3[%c3_43, %c0_44] : memref<5x128xf32, #tpu.memory_space<vmem>>, vector<1x128xf32>
    tpu.vector_store %arg3[%c3_43, %c0_44], %93 {strides = array<i32>} : memref<5x128xf32, #tpu.memory_space<vmem>>, vector<1x128xf32>,
    %95 = arith.mulf %38, %35 : vector<1x128xf32>
    %c4_45 = arith.constant 4 : index
    %c0_46 = arith.constant 0 : index
    %96 = vector.load %arg3[%c4_45, %c0_46] : memref<5x128xf32, #tpu.memory_space<vmem>>, vector<1x128xf32>
    tpu.vector_store %arg3[%c4_45, %c0_46], %95 {strides = array<i32>} : memref<5x128xf32, #tpu.memory_space<vmem>>, vector<1x128xf32>,
    return
  }
  func.func @transform_0(%arg0: i32) -> (i32, i32, i32) {
    %c0_i32 = arith.constant 0 : i32
    %c0_i32_0 = arith.constant 0 : i32
    %c0_i32_1 = arith.constant 0 : i32
    return %c0_i32, %c0_i32_0, %arg0 : i32, i32, i32
  }
  func.func @transform_1(%arg0: i32) -> (i32, i32) {
    %c0_i32 = arith.constant 0 : i32
    %c0_i32_0 = arith.constant 0 : i32
    return %c0_i32, %arg0 : i32, i32
  }
  func.func @transform_2(%arg0: i32) -> (i32, i32) {
    %c0_i32 = arith.constant 0 : i32
    %c0_i32_0 = arith.constant 0 : i32
    return %c0_i32, %arg0 : i32, i32
  }
}

</mosaic_0001>

<llo_original>
// kernel: dice_forward.1
$region0: #{dice_forward.1}
  #allocation0 [shape = 'u32[]', space=smem, size = 0x4, offset = 0x4, fixed_abs, tag = 'smem constant byte address 0x4 - core index']
  #allocation1 [shape = 'u32[144,128]{1,0:T(1,128)}', space=vmem, size = 0x12000, scoped, tag = 'internal scratch']
  %s0 = inlined_call_operand.vmem [shape: f32[6,32,256], index: 0, kind: input, shape index: {}]
  %s1 = inlined_call_operand.vmem [shape: f32[5,256], index: 1, kind: input, shape index: {}]
  %s2 = inlined_call_operand.vmem [shape: f32[5,256], index: 2, kind: output, shape index: {}]
  %s3 = sld [smem:[#allocation0]]
  $region79: #{dice_forward.1} parent=0
    _
  %s5 = ssub.s32 1, %s3
  %s6 = scalar_select 0, %s5, %s3
  $region1: #{dice_forward.1} parent=0
    #allocation2 [shape = 'u8[196608]{0}', space=vmem, size = 0x30000, scoped, tag = 'input window, operand 0']
    loop: start=0, step=1, limit=4
    $region2: #{dice_forward.1} parent=1 // loop_pre_header
      _
    $region3: #{dice_forward.1} parent=1 // loop_header
      %s8 = sphi 0, %s12
      %p9 = scmp.ge.s32.totalorder %s8, 4
      %s18 = sphi 0, %s20
      %s21 = sphi 0, %s18
      %s22 = sphi 0, %s21
      %s38 = sphi 0, %s22
      %s44 = sphi 0, %s46
      %s47 = sphi 0, %s44
      %s48 = sphi 0, %s47
      %s64 = sphi 0, %s48
      %s70 = sphi 0, %s72
      %s73 = sphi 0, %s70
      %s74 = sphi 0, %s73
      %s90 = sphi 0, %s74
    $region4: #{dice_forward.1} parent=1 // loop_header_branch
      %11 = sbr.rel (%p9) target = $region8
    $region5: #{dice_forward.1} parent=1 // loop_body
      %s13 = ssub.s32 %s8, 1
      %s14 = ssub.s32 %s8, 2
      %s15 = sadd.s32 %s8, 1
      %s16 = ssub.s32 %s8, %s15
      %p17 = scmp.eq.s32.totalorder %s16, 0
      %s19 = sadd.s32 %s18, 1
      %s20 = scalar_select %p17, %s18, %s19
      %p23 = pneg %p17
      %p24 = scmp.eq.s32.totalorder %s8, 1
      %p25 = por %p23, %p24
      %p26 = scmp.ne.s32.totalorder %s18, %s21
      %p27 = scmp.eq.s32.totalorder %s8, 0
      %p28 = por %p26, %p27
      %p29 = scmp.ne.s32.totalorder %s18, %s21
      %p30 = scmp.eq.s32.totalorder %s13, 1
      %p31 = por %p29, %p30
      %p32 = scmp.ne.s32.totalorder %s21, %s22
      %p33 = scmp.eq.s32.totalorder %s13, 0
      %p34 = por %p32, %p33
      %p35 = scmp.ne.s32.totalorder %s21, %s22
      %p36 = scmp.eq.s32.totalorder %s14, 1
      %p37 = por %p35, %p36
      %p39 = scmp.ne.s32.totalorder %s22, %s38
      %p40 = scmp.eq.s32.totalorder %s14, 0
      %p41 = por %p39, %p40
      %s42 = ssub.s32 %s8, %s15
      %p43 = scmp.eq.s32.totalorder %s42, 0
      %s45 = sadd.s32 %s44, 1
      %s46 = scalar_select %p43, %s44, %s45
      %p49 = pneg %p43
      %p50 = scmp.eq.s32.totalorder %s8, 1
      %p51 = por %p49, %p50
      %p52 = scmp.ne.s32.totalorder %s44, %s47
      %p53 = scmp.eq.s32.totalorder %s8, 0
      %p54 = por %p52, %p53
      %p55 = scmp.ne.s32.totalorder %s44, %s47
      %p56 = scmp.eq.s32.totalorder %s13, 1
      %p57 = por %p55, %p56
      %p58 = scmp.ne.s32.totalorder %s47, %s48
      %p59 = scmp.eq.s32.totalorder %s13, 0
      %p60 = por %p58, %p59
      %p61 = scmp.ne.s32.totalorder %s47, %s48
      %p62 = scmp.eq.s32.totalorder %s14, 1
      %p63 = por %p61, %p62
      %p65 = scmp.ne.s32.totalorder %s48, %s64
      %p66 = scmp.eq.s32.totalorder %s14, 0
      %p67 = por %p65, %p66
      %s68 = ssub.s32 %s8, %s15
      %p69 = scmp.eq.s32.totalorder %s68, 0
      %s71 = sadd.s32 %s70, 1
      %s72 = scalar_select %p69, %s70, %s71
      %p75 = pneg %p69
      %p76 = scmp.eq.s32.totalorder %s8, 1
      %p77 = por %p75, %p76
      %p78 = scmp.ne.s32.totalorder %s70, %s73
      %p79 = scmp.eq.s32.totalorder %s8, 0
      %p80 = por %p78, %p79
      %p81 = scmp.ne.s32.totalorder %s70, %s73
      %p82 = scmp.eq.s32.totalorder %s13, 1
      %p83 = por %p81, %p82
      %p84 = scmp.ne.s32.totalorder %s73, %s74
      %p85 = scmp.eq.s32.totalorder %s13, 0
      %p86 = por %p84, %p85
      %p87 = scmp.ne.s32.totalorder %s73, %s74
      %p88 = scmp.eq.s32.totalorder %s14, 1
      %p89 = por %p87, %p88
      %p91 = scmp.ne.s32.totalorder %s74, %s90
      %p92 = scmp.eq.s32.totalorder %s14, 0
      %p93 = por %p91, %p92
      %p94 = scmp.le.s32.totalorder 1, %s8
      %p95 = scmp.lt.s32.totalorder %s8, 3
      %p96 = pnand %p94, %p95
      %p97 = pneg %p96
      // Predicated region
      $region9: #{dice_forward.1} parent=5 // pred_check
        _
      $region10: #{dice_forward.1} parent=5 // pred_check_branch
        %99 = sbr.rel (%p96) target = $region12
      $region11: #{dice_forward.1} parent=5 // pred_region
        %s100 = ssub.s32 %s8, 1
      $region12: #{dice_forward.1} parent=5 // pred_fallthru
        _
      %p101 = scmp.lt.s32.totalorder %s8, 2
      // Predicated region
      $region13: #{dice_forward.1} parent=5 // pred_check
        %p102 = pneg %p101
      $region14: #{dice_forward.1} parent=5 // pred_check_branch
        %104 = sbr.rel (%p102) target = $region16
      $region15: #{dice_forward.1} parent=5 // pred_region
        // Predicated region
        $region17: #{dice_forward.1} parent=15 // pred_check
          %p105 = pneg %p28
        $region18: #{dice_forward.1} parent=15 // pred_check_branch
          %107 = sbr.rel (%p105) target = $region20
        $region19: #{dice_forward.1} parent=15 // pred_region
          %s108 = sand.u32 %s18, 1
          %s109 = sand.u32 %s18, 1
          %s110 = smul.addr %s109, 192
          %s111 = scalar_lea.vmem [#allocation2], %s110
          %s112 = smul.addr %s8, 8
          %s113 = scalar_lea.vmem %s0, %s112
          // Predicated region
          $region21: #{dice_forward.1} parent=19 // pred_check
            _
          $region22: #{dice_forward.1} parent=19 // pred_check_branch
            %115 = sbr.rel (0) target = $region24
          $region23: #{dice_forward.1} parent=19 // pred_region
            // Predicated region
            $region25: #{dice_forward.1} parent=23 // pred_check
              _
            $region26: #{dice_forward.1} parent=23 // pred_check_branch
              %117 = sbr.rel (0) target = $region28
            $region27: #{dice_forward.1} parent=23 // pred_region
              // Predicated region
              $region40: #{dice_forward.1} parent=27 // pred_check
                _
              $region41: #{dice_forward.1} parent=27 // pred_check_branch
                %178 = sbr.rel (0) target = $region43
              $region42: #{dice_forward.1} parent=27 // pred_region
                loop: start=0, step=1, limit=1
                $region44: #{dice_forward.1} parent=42 // loop_pre_header
                  _
                $region45: #{dice_forward.1} parent=42 // loop_header
                  %s180 = sphi 0, %s184
                  %p181 = scmp.ge.s32.totalorder %s180, 1
                  %s185 = sphi %s113, %s113
                  %s186 = sphi %s111, %s111
                $region46: #{dice_forward.1} parent=42 // loop_header_branch
                  %183 = sbr.rel (%p181) target = $region50
                $region47: #{dice_forward.1} parent=42 // loop_body
                  %v187 = vld [vmem:[%s185] sm:$0xff]
                  %188 = vst [vmem:[%s186] sm:$0xff] %v187
                  %v189 = vld [vmem:[%s185 + $0x10] sm:$0xff]
                  %190 = vst [vmem:[%s186 + $0x8] sm:$0xff] %v189
                  %v191 = vld [vmem:[%s185 + $0x20] sm:$0xff]
                  %192 = vst [vmem:[%s186 + $0x10] sm:$0xff] %v191
                  %v193 = vld [vmem:[%s185 + $0x30] sm:$0xff]
                  %194 = vst [vmem:[%s186 + $0x18] sm:$0xff] %v193
                  %v195 = vld [vmem:[%s185 + $0x40] sm:$0xff]
                  %196 = vst [vmem:[%s186 + $0x20] sm:$0xff] %v195
                  %v197 = vld [vmem:[%s185 + $0x50] sm:$0xff]
                  %198 = vst [vmem:[%s186 + $0x28] sm:$0xff] %v197
                  %v199 = vld [vmem:[%s185 + $0x60] sm:$0xff]
                  %200 = vst [vmem:[%s186 + $0x30] sm:$0xff] %v199
                  %v201 = vld [vmem:[%s185 + $0x70] sm:$0xff]
                  %202 = vst [vmem:[%s186 + $0x38] sm:$0xff] %v201
                  %v203 = vld [vmem:[%s185 + $0x80] sm:$0xff]
                  %204 = vst [vmem:[%s186 + $0x40] sm:$0xff] %v203
                  %v205 = vld [vmem:[%s185 + $0x90] sm:$0xff]
                  %206 = vst [vmem:[%s186 + $0x48] sm:$0xff] %v205
                  %v207 = vld [vmem:[%s185 + $0xa0] sm:$0xff]
                  %208 = vst [vmem:[%s186 + $0x50] sm:$0xff] %v207
                  %v209 = vld [vmem:[%s185 + $0xb0] sm:$0xff]
                  %210 = vst [vmem:[%s186 + $0x58] sm:$0xff] %v209
                  %v211 = vld [vmem:[%s185 + $0xc0] sm:$0xff]
                  %212 = vst [vmem:[%s186 + $0x60] sm:$0xff] %v211
                  %v213 = vld [vmem:[%s185 + $0xd0] sm:$0xff]
                  %214 = vst [vmem:[%s186 + $0x68] sm:$0xff] %v213
                  %v215 = vld [vmem:[%s185 + $0xe0] sm:$0xff]
                  %216 = vst [vmem:[%s186 + $0x70] sm:$0xff] %v215
                  %v217 = vld [vmem:[%s185 + $0xf0] sm:$0xff]
                  %218 = vst [vmem:[%s186 + $0x78] sm:$0xff] %v217
                  %v219 = vld [vmem:[%s185 + $0x100] sm:$0xff]
                  %220 = vst [vmem:[%s186 + $0x80] sm:$0xff] %v219
                  %v221 = vld [vmem:[%s185 + $0x110] sm:$0xff]
                  %222 = vst [vmem:[%s186 + $0x88] sm:$0xff] %v221
                  %v223 = vld [vmem:[%s185 + $0x120] sm:$0xff]
                  %224 = vst [vmem:[%s186 + $0x90] sm:$0xff] %v223
                  %v225 = vld [vmem:[%s185 + $0x130] sm:$0xff]
                  %226 = vst [vmem:[%s186 + $0x98] sm:$0xff] %v225
                  %v227 = vld [vmem:[%s185 + $0x140] sm:$0xff]
                  %228 = vst [vmem:[%s186 + $0xa0] sm:$0xff] %v227
                  %v229 = vld [vmem:[%s185 + $0x150] sm:$0xff]
                  %230 = vst [vmem:[%s186 + $0xa8] sm:$0xff] %v229
                  %v231 = vld [vmem:[%s185 + $0x160] sm:$0xff]
                  %232 = vst [vmem:[%s186 + $0xb0] sm:$0xff] %v231
                  %v233 = vld [vmem:[%s185 + $0x170] sm:$0xff]
                  %234 = vst [vmem:[%s186 + $0xb8] sm:$0xff] %v233
                $region48: #{dice_forward.1} parent=42 // loop_footer
                  %s184 = sadd.s32 1, %s180
                $region49: #{dice_forward.1} parent=42 // loop_footer_branch
                  %179 = sbr.rel target = $region45
                $region50: #{dice_forward.1} parent=42 // loop_exit
                  _
              $region43: #{dice_forward.1} parent=27 // pred_fallthru
                _
              // Predicated region
              $region51: #{dice_forward.1} parent=27 // pred_check
                _
              $region52: #{dice_forward.1} parent=27 // pred_check_branch
                %236 = sbr.rel target = $region54
              $region53: #{dice_forward.1} parent=27 // pred_region
                _
              $region54: #{dice_forward.1} parent=27 // pred_fallthru
                _
            $region28: #{dice_forward.1} parent=23 // pred_fallthru
              _
            // Predicated region
            $region29: #{dice_forward.1} parent=23 // pred_check
              _
            $region30: #{dice_forward.1} parent=23 // pred_check_branch
              %119 = sbr.rel target = $region32
            $region31: #{dice_forward.1} parent=23 // pred_region
              loop: start=0, step=1, limit=1
              $region33: #{dice_forward.1} parent=31 // loop_pre_header
                _
              $region34: #{dice_forward.1} parent=31 // loop_header
                %s122 = sphi 0, %s126
                %p123 = scmp.ge.s32.totalorder %s122, 1
                %s127 = sphi %s113, %s113
                %s128 = sphi %s111, %s111
              $region35: #{dice_forward.1} parent=31 // loop_header_branch
                %125 = sbr.rel (%p123) target = $region39
              $region36: #{dice_forward.1} parent=31 // loop_body
                %v129 = vld [vmem:[%s127] sm:$0xff]
                %130 = vst [vmem:[%s128] sm:$0xff] %v129
                %v131 = vld [vmem:[%s127 + $0x10] sm:$0xff]
                %132 = vst [vmem:[%s128 + $0x8] sm:$0xff] %v131
                %v133 = vld [vmem:[%s127 + $0x20] sm:$0xff]
                %134 = vst [vmem:[%s128 + $0x10] sm:$0xff] %v133
                %v135 = vld [vmem:[%s127 + $0x30] sm:$0xff]
                %136 = vst [vmem:[%s128 + $0x18] sm:$0xff] %v135
                %v137 = vld [vmem:[%s127 + $0x40] sm:$0xff]
                %138 = vst [vmem:[%s128 + $0x20] sm:$0xff] %v137
                %v139 = vld [vmem:[%s127 + $0x50] sm:$0xff]
                %140 = vst [vmem:[%s128 + $0x28] sm:$0xff] %v139
                %v141 = vld [vmem:[%s127 + $0x60] sm:$0xff]
                %142 = vst [vmem:[%s128 + $0x30] sm:$0xff] %v141
                %v143 = vld [vmem:[%s127 + $0x70] sm:$0xff]
                %144 = vst [vmem:[%s128 + $0x38] sm:$0xff] %v143
                %v145 = vld [vmem:[%s127 + $0x80] sm:$0xff]
                %146 = vst [vmem:[%s128 + $0x40] sm:$0xff] %v145
                %v147 = vld [vmem:[%s127 + $0x90] sm:$0xff]
                %148 = vst [vmem:[%s128 + $0x48] sm:$0xff] %v147
                %v149 = vld [vmem:[%s127 + $0xa0] sm:$0xff]
                %150 = vst [vmem:[%s128 + $0x50] sm:$0xff] %v149
                %v151 = vld [vmem:[%s127 + $0xb0] sm:$0xff]
                %152 = vst [vmem:[%s128 + $0x58] sm:$0xff] %v151
                %v153 = vld [vmem:[%s127 + $0xc0] sm:$0xff]
                %154 = vst [vmem:[%s128 + $0x60] sm:$0xff] %v153
                %v155 = vld [vmem:[%s127 + $0xd0] sm:$0xff]
                %156 = vst [vmem:[%s128 + $0x68] sm:$0xff] %v155
                %v157 = vld [vmem:[%s127 + $0xe0] sm:$0xff]
                %158 = vst [vmem:[%s128 + $0x70] sm:$0xff] %v157
                %v159 = vld [vmem:[%s127 + $0xf0] sm:$0xff]
                %160 = vst [vmem:[%s128 + $0x78] sm:$0xff] %v159
                %v161 = vld [vmem:[%s127 + $0x100] sm:$0xff]
                %162 = vst [vmem:[%s128 + $0x80] sm:$0xff] %v161
                %v163 = vld [vmem:[%s127 + $0x110] sm:$0xff]
                %164 = vst [vmem:[%s128 + $0x88] sm:$0xff] %v163
                %v165 = vld [vmem:[%s127 + $0x120] sm:$0xff]
                %166 = vst [vmem:[%s128 + $0x90] sm:$0xff] %v165
                %v167 = vld [vmem:[%s127 + $0x130] sm:$0xff]
                %168 = vst [vmem:[%s128 + $0x98] sm:$0xff] %v167
                %v169 = vld [vmem:[%s127 + $0x140] sm:$0xff]
                %170 = vst [vmem:[%s128 + $0xa0] sm:$0xff] %v169
                %v171 = vld [vmem:[%s127 + $0x150] sm:$0xff]
                %172 = vst [vmem:[%s128 + $0xa8] sm:$0xff] %v171
                %v173 = vld [vmem:[%s127 + $0x160] sm:$0xff]
                %174 = vst [vmem:[%s128 + $0xb0] sm:$0xff] %v173
                %v175 = vld [vmem:[%s127 + $0x170] sm:$0xff]
                %176 = vst [vmem:[%s128 + $0xb8] sm:$0xff] %v175
              $region37: #{dice_forward.1} parent=31 // loop_footer
                %s126 = sadd.s32 1, %s122
              $region38: #{dice_forward.1} parent=31 // loop_footer_branch
                %121 = sbr.rel target = $region34
              $region39: #{dice_forward.1} parent=31 // loop_exit
                _
            $region32: #{dice_forward.1} parent=23 // pred_fallthru
              _
          $region24: #{dice_forward.1} parent=19 // pred_fallthru
            _
          %237 = vnop
        $region20: #{dice_forward.1} parent=15 // pred_fallthru
          _
        // Predicated region
        $region55: #{dice_forward.1} parent=15 // pred_check
          %p238 = pneg %p54
        $region56: #{dice_forward.1} parent=15 // pred_check_branch
          %240 = sbr.rel (%p238) target = $region58
        $region57: #{dice_forward.1} parent=15 // pred_region
          %p241 = scmp.lt.s32.totalorder %s8, 1
          %s242 = scalar_select %p241, %s8, 1
          %s243 = smul.addr %s242, 8
          %s244 = scalar_lea.vmem %s1, %s243
        $region58: #{dice_forward.1} parent=15 // pred_fallthru
          _
      $region16: #{dice_forward.1} parent=5 // pred_fallthru
        _
      %p245 = scmp.le.s32.totalorder 1, %s8
      %p246 = scmp.lt.s32.totalorder %s8, 3
      %p247 = pnand %p245, %p246
      %p248 = pneg %p247
      // Predicated region
      $region59: #{dice_forward.1} parent=5 // pred_check
        _
      $region60: #{dice_forward.1} parent=5 // pred_check_branch
        %250 = sbr.rel (%p247) target = $region62
      $region61: #{dice_forward.1} parent=5 // pred_region
        %s251 = ssub.s32 %s8, 1
        %s252 = sand.u32 %s21, 1
        %s253 = sand.u32 %s21, 1
        %s254 = smul.addr %s253, 192
        %s255 = scalar_lea.vmem [#allocation2], %s254
        // Predicated region
        $region63: #{dice_forward.1} parent=61 // pred_check
          %p256 = pneg %p34
        $region64: #{dice_forward.1} parent=61 // pred_check_branch
          %258 = sbr.rel (%p256) target = $region66
        $region65: #{dice_forward.1} parent=61 // pred_region
          _
        $region66: #{dice_forward.1} parent=61 // pred_fallthru
          _
        %s259 = sand.u32 %s21, 1
        %s260 = sand.u32 %s21, 1
        %s261 = smul.addr %s260, 192
        %s262 = scalar_lea.vmem [#allocation2], %s261
        %p263 = pneg %p34
        %p264 = pneg %p31
        %p265 = scmp.lt.s32.totalorder %s13, 1
        %s266 = scalar_select %p265, %s13, 1
        %s267 = smul.addr %s266, 8
        %s268 = scalar_lea.vmem %s1, %s267
        %p269 = pneg %p60
        %p270 = pneg %p57
        %p271 = pneg %p86
        %p272 = pneg %p83
        %p273 = scmp.lt.s32.totalorder %s13, 1
        %s274 = scalar_select %p273, %s13, 1
        %s275 = smul.addr %s274, 8
        %s276 = scalar_lea.vmem %s2, %s275
        %p277 = scmp.lt.s32.totalorder %s13, 1
        %s278 = scalar_select %p277, %s13, 1
        %s279 = smul.addr %s278, 8
        %s280 = scalar_lea.vmem %s1, %s279
        %p281 = scmp.lt.s32.totalorder %s13, 1
        %s282 = scalar_select %p281, %s13, 1
        %s283 = smul.addr %s282, 8
        %s284 = scalar_lea.vmem %s2, %s283
        %v285 = vld [vmem:[%s255] sm:$0xff]
        %v286 = vld [vmem:[%s255 + $0x8] sm:$0xff]
        %v287 = vld [vmem:[%s255 + $0x10] sm:$0xff]
        %v288 = vld [vmem:[%s255 + $0x18] sm:$0xff]
        %s289 = scalar_lea.vmem %s255, 32 [#allocation2]
        %v290 = vld [vmem:[%s289] sm:$0xff]
        %v291 = vld [vmem:[%s289 + $0x8] sm:$0xff]
        %v292 = vld [vmem:[%s289 + $0x10] sm:$0xff]
        %v293 = vld [vmem:[%s289 + $0x18] sm:$0xff]
        %s294 = scalar_lea.vmem %s255, 64 [#allocation2]
        %v295 = vld [vmem:[%s294] sm:$0xff]
        %v296 = vld [vmem:[%s294 + $0x8] sm:$0xff]
        %v297 = vld [vmem:[%s294 + $0x10] sm:$0xff]
        %v298 = vld [vmem:[%s294 + $0x18] sm:$0xff]
        %s299 = scalar_lea.vmem %s255, 96 [#allocation2]
        %v300 = vld [vmem:[%s299] sm:$0xff]
        %v301 = vld [vmem:[%s299 + $0x8] sm:$0xff]
        %v302 = vld [vmem:[%s299 + $0x10] sm:$0xff]
        %v303 = vld [vmem:[%s299 + $0x18] sm:$0xff]
        %s304 = scalar_lea.vmem %s255, 128 [#allocation2]
        %v305 = vld [vmem:[%s304] sm:$0xff]
        %v306 = vld [vmem:[%s304 + $0x8] sm:$0xff]
        %v307 = vld [vmem:[%s304 + $0x10] sm:$0xff]
        %v308 = vld [vmem:[%s304 + $0x18] sm:$0xff]
        %s309 = scalar_lea.vmem %s255, 160 [#allocation2]
        %v310 = vld [vmem:[%s309] sm:$0xff]
        %v311 = vld [vmem:[%s309 + $0x8] sm:$0xff]
        %v312 = vld [vmem:[%s309 + $0x10] sm:$0xff]
        %v313 = vld [vmem:[%s309 + $0x18] sm:$0xff]
        %v314 = vsub.f32 %v295, %v300
        %v315 = vsub.f32 %v296, %v301
        %v316 = vsub.f32 %v297, %v302
        %v317 = vsub.f32 %v298, %v303
        %v318 = vsub.f32 %v305, %v310
        %v319 = vsub.f32 %v306, %v311
        %v320 = vsub.f32 %v307, %v312
        %v321 = vsub.f32 %v308, %v313
        %v322 = vsub.f32 %v285, %v290
        %v323 = vsub.f32 %v286, %v291
        %v324 = vsub.f32 %v287, %v292
        %v325 = vsub.f32 %v288, %v293
        %v326 = vmul.f32 %v285, %v295
        %v327 = vmul.f32 %v286, %v296
        %v328 = vmul.f32 %v287, %v297
        %v329 = vmul.f32 %v288, %v298
        %v330 = vadd.f32 %v326, %v327
        %v331 = vadd.f32 %v330, %v328
        %v332 = vadd.f32 %v331, %v329
        %v333 = vrot.slane %v332, 4
        %v334 = vadd.f32 %v332, %v333
        %v335 = vrot.slane %v334, 2
        %v336 = vadd.f32 %v334, %v335
        %v337 = vrot.slane %v336, 1
        %v338 = vadd.f32 %v336, %v337
        %v339 = vmul.f32 %v285, %v305
        %v340 = vmul.f32 %v286, %v306
        %v341 = vmul.f32 %v287, %v307
        %v342 = vmul.f32 %v288, %v308
        %v343 = vadd.f32 %v339, %v340
        %v344 = vadd.f32 %v343, %v341
        %v345 = vadd.f32 %v344, %v342
        %v346 = vrot.slane %v345, 4
        %v347 = vadd.f32 %v345, %v346
        %v348 = vrot.slane %v347, 2
        %v349 = vadd.f32 %v347, %v348
        %v350 = vrot.slane %v349, 1
        %v351 = vadd.f32 %v349, %v350
        %v352 = vmul.f32 %v290, %v300
        %v353 = vmul.f32 %v291, %v301
        %v354 = vmul.f32 %v292, %v302
        %v355 = vmul.f32 %v293, %v303
        %v356 = vadd.f32 %v352, %v353
        %v357 = vadd.f32 %v356, %v354
        %v358 = vadd.f32 %v357, %v355
        %v359 = vrot.slane %v358, 4
        %v360 = vadd.f32 %v358, %v359
        %v361 = vrot.slane %v360, 2
        %v362 = vadd.f32 %v360, %v361
        %v363 = vrot.slane %v362, 1
        %v364 = vadd.f32 %v362, %v363
        %v365 = vmul.f32 %v290, %v310
        %v366 = vmul.f32 %v291, %v311
        %v367 = vmul.f32 %v292, %v312
        %v368 = vmul.f32 %v293, %v313
        %v369 = vadd.f32 %v365, %v366
        %v370 = vadd.f32 %v369, %v367
        %v371 = vadd.f32 %v370, %v368
        %v372 = vrot.slane %v371, 4
        %v373 = vadd.f32 %v371, %v372
        %v374 = vrot.slane %v373, 2
        %v375 = vadd.f32 %v373, %v374
        %v376 = vrot.slane %v375, 1
        %v377 = vadd.f32 %v375, %v376
        %v378 = vmul.f32 %v314, %v314
        %v379 = vmul.f32 %v315, %v315
        %v380 = vmul.f32 %v316, %v316
        %v381 = vmul.f32 %v317, %v317
        %v382 = vadd.f32 %v378, %v379
        %v383 = vadd.f32 %v382, %v380
        %v384 = vadd.f32 %v383, %v381
        %v385 = vrot.slane %v384, 4
        %v386 = vadd.f32 %v384, %v385
        %v387 = vrot.slane %v386, 2
        %v388 = vadd.f32 %v386, %v387
        %v389 = vrot.slane %v388, 1
        %v390 = vadd.f32 %v388, %v389
        %v391 = vmul.f32 %v318, %v318
        %v392 = vmul.f32 %v319, %v319
        %v393 = vmul.f32 %v320, %v320
        %v394 = vmul.f32 %v321, %v321
        %v395 = vadd.f32 %v391, %v392
        %v396 = vadd.f32 %v395, %v393
        %v397 = vadd.f32 %v396, %v394
        %v398 = vrot.slane %v397, 4
        %v399 = vadd.f32 %v397, %v398
        %v400 = vrot.slane %v399, 2
        %v401 = vadd.f32 %v399, %v400
        %v402 = vrot.slane %v401, 1
        %v403 = vadd.f32 %v401, %v402
        %v404 = vmul.f32 %v322, %v322
        %v405 = vmul.f32 %v323, %v323
        %v406 = vmul.f32 %v324, %v324
        %v407 = vmul.f32 %v325, %v325
        %v408 = vadd.f32 %v404, %v405
        %v409 = vadd.f32 %v408, %v406
        %v410 = vadd.f32 %v409, %v407
        %v411 = vrot.slane %v410, 4
        %v412 = vadd.f32 %v410, %v411
        %v413 = vrot.slane %v412, 2
        %v414 = vadd.f32 %v412, %v413
        %v415 = vrot.slane %v414, 1
        %v416 = vadd.f32 %v414, %v415
        %v417 = vld [vmem:[%s280] sm:$0x1]
        %v418 = vld [vmem:[%s280 + $0x1] sm:$0x1]
        %v419 = vld [vmem:[%s280 + $0x2] sm:$0x1]
        %v420 = vld [vmem:[%s280 + $0x3] sm:$0x1]
        %v421 = vld [vmem:[%s280 + $0x4] sm:$0x1]
        %v422 = vadd.f32 %v338, %v364
        %v423 = vadd.f32 %v351, %v377
        %v424 = vmul.f32 %v418, %v417
        %v425 = vsub.f32 %v338, %v351
        %v426 = vxor.u32 %v425, 2147483648
        %v427 = vmul.f32 %v426, 1.442695
        %v428 = vpow.pop %v427
        %v429 = vadd.f32 %v428, 1.0
        %v430 = vrcp.pop %v429
        %v431 = vmul.f32 1.0, %v430
        %v432 = vadd.f32 %v431, 1e-10
        %v433 = vlog2.pop %v432
        %v434 = vmul.f32 %v433, 0.6931472
        %v435 = vmul.f32 %v424, %v434
        %436 = vst [vmem:[%s284] sm:$0x1] %v435
        %v437 = vsub.f32 %v377, %v364
        %v438 = vxor.u32 %v437, 2147483648
        %v439 = vmul.f32 %v438, 1.442695
        %v440 = vpow.pop %v439
        %v441 = vadd.f32 %v440, 1.0
        %v442 = vrcp.pop %v441
        %v443 = vmul.f32 1.0, %v442
        %v444 = vadd.f32 %v443, 1e-10
        %v445 = vlog2.pop %v444
        %v446 = vmul.f32 %v445, 0.6931472
        %v447 = vmul.f32 %v417, %v446
        %v448 = vsub.f32 1.0, %v417
        %v449 = vsub.f32 %v364, %v377
        %v450 = vxor.u32 %v449, 2147483648
        %v451 = vmul.f32 %v450, 1.442695
        %v452 = vpow.pop %v451
        %v453 = vadd.f32 %v452, 1.0
        %v454 = vrcp.pop %v453
        %v455 = vmul.f32 1.0, %v454
        %v456 = vadd.f32 %v455, 1e-10
        %v457 = vlog2.pop %v456
        %v458 = vmul.f32 %v457, 0.6931472
        %v459 = vmul.f32 %v448, %v458
        %v460 = vadd.f32 %v447, %v459
        %v461 = vmul.f32 %v418, %v460
        %462 = vst [vmem:[%s284 + $0x1] sm:$0x1] %v461
        %v463 = vsub.f32 %v422, %v423
        %v464 = vxor.u32 %v463, 2147483648
        %v465 = vmul.f32 %v464, 1.442695
        %v466 = vpow.pop %v465
        %v467 = vadd.f32 %v466, 1.0
        %v468 = vrcp.pop %v467
        %v469 = vmul.f32 1.0, %v468
        %v470 = vadd.f32 %v469, 1e-10
        %v471 = vlog2.pop %v470
        %v472 = vmul.f32 %v471, 0.6931472
        %v473 = vmul.f32 %v418, %v472
        %474 = vst [vmem:[%s284 + $0x2] sm:$0x1] %v473
        %v475 = vmul.f32 %v420, %v390
        %v476 = vmul.f32 %v421, %v403
        %v477 = vadd.f32 %v475, %v476
        %478 = vst [vmem:[%s284 + $0x3] sm:$0x1] %v477
        %v479 = vmul.f32 %v419, %v416
        %480 = vst [vmem:[%s284 + $0x4] sm:$0x1] %v479
        %p481 = scmp.lt.s32.totalorder %s13, 1
        %s482 = scalar_select %p481, %s13, 1
        %s483 = smul.addr %s482, 8
        %s484 = scalar_lea.vmem %s2, %s483
        // Predicated region
        $region67: #{dice_forward.1} parent=61 // pred_check
          %p485 = pneg %p83
        $region68: #{dice_forward.1} parent=61 // pred_check_branch
          %487 = sbr.rel (%p485) target = $region70
        $region69: #{dice_forward.1} parent=61 // pred_region
          _
        $region70: #{dice_forward.1} parent=61 // pred_fallthru
          _
      $region62: #{dice_forward.1} parent=5 // pred_fallthru
        _
      %p488 = scmp.le.s32.totalorder 2, %s8
      // Predicated region
      $region71: #{dice_forward.1} parent=5 // pred_check
        %p489 = pneg %p488
      $region72: #{dice_forward.1} parent=5 // pred_check_branch
        %491 = sbr.rel (%p489) target = $region74
      $region73: #{dice_forward.1} parent=5 // pred_region
        %s492 = ssub.s32 %s8, 2
        // Predicated region
        $region75: #{dice_forward.1} parent=73 // pred_check
          %p493 = pneg %p89
        $region76: #{dice_forward.1} parent=73 // pred_check_branch
          %495 = sbr.rel (%p493) target = $region78
        $region77: #{dice_forward.1} parent=73 // pred_region
          %p496 = scmp.lt.s32.totalorder %s14, 1
          %s497 = scalar_select %p496, %s14, 1
          %s498 = smul.addr %s497, 8
          %s499 = scalar_lea.vmem %s2, %s498
        $region78: #{dice_forward.1} parent=73 // pred_fallthru
          _
      $region74: #{dice_forward.1} parent=5 // pred_fallthru
        _
    $region6: #{dice_forward.1} parent=1 // loop_footer
      %s12 = sadd.s32 1, %s8
    $region7: #{dice_forward.1} parent=1 // loop_footer_branch
      %7 = sbr.rel target = $region3
    $region8: #{dice_forward.1} parent=1 // loop_exit
      _

</llo_original>
